<compile_context>
chip_gen: v7x
topology: tpu7x:2x2x1
jax: 0.10.0
libtpu: 0.0.40
codegen_flags: <defaults>
</compile_context>

<pallas_src>
import functools

import jax
import jax.numpy as jnp
from jax.experimental import pallas as pl
from jax.experimental.pallas import tpu as pltpu


def _round_up(n: int, m: int) -> int:
    return (n + m - 1) // m * m


def _cdiv(a: int, b: int) -> int:
    return -(-a // b)


def _default_vmem_limit_bytes() -> int:
    """Generation-aware VMEM budget: leave headroom below physical capacity."""
    try:
        cap = int(pltpu.get_tpu_info().vmem_capacity_bytes)
    except Exception:  # no query available -> conservative default
        cap = 64 * 1024 * 1024
    return max(32 * 1024 * 1024, min(cap - 16 * 1024 * 1024, 100 * 1024 * 1024))


_VMEM_LIMIT_BYTES = _default_vmem_limit_bytes()


def _pick_col_tile(hp: int, col_tile: int) -> int:
    """Largest multiple-of-128 divisor of hp that is <= col_tile."""
    best = 128
    d = 128
    limit = min(hp, max(col_tile, 128))
    while d <= limit:
        if hp % d == 0:
            best = d
        d += 128
    return best


def _lstm_cell_kernel(x_ref, h_ref, c_ref, w_ref, u_ref, b_ref,
                      h_out_ref, c_out_ref):
    """One (row-tile, hidden-column-tile) block of the GraphLSTM update.

    x_ref : (rt, Ip)        h_ref : (rt, Hp)      c_ref : (rt, ct)
    w_ref : (4, Ip, ct)     u_ref : (4, Hp, ct)   b_ref : (4, ct)
    h_out_ref, c_out_ref : (rt, ct)   (ct is a multiple of 128)
    """
    x = x_ref[...]
    h = h_ref[...]

    def gate(g):
        # Two MXU dots accumulating in f32 (x@W_g + h@U_g), plus bias.
        acc = jnp.dot(x, w_ref[g], preferred_element_type=jnp.float32)
        acc = acc + jnp.dot(h, u_ref[g], preferred_element_type=jnp.float32)
        return acc + b_ref[g:g + 1, :].astype(jnp.float32)

    # Gate-by-gate: peak live f32 stays at (rt, ct), not (rt, 4*Hp).
    i_gate = jax.nn.sigmoid(gate(0))
    f_gate = jax.nn.sigmoid(gate(1))
    o_gate = jax.nn.sigmoid(gate(2))
    g_gate = jnp.tanh(gate(3))

    c_new = f_gate * c_ref[...].astype(jnp.float32) + i_gate * g_gate
    h_new = o_gate * jnp.tanh(c_new)

    c_out_ref[...] = c_new.astype(c_out_ref.dtype)
    h_out_ref[...] = h_new.astype(h_out_ref.dtype)


@functools.partial(jax.jit,
                   static_argnames=("row_tile", "col_tile", "mxu_dtype"))
def graph_lstm_cell(x, h, c, w, u, b, *,
                    row_tile: int = 512,
                    col_tile: int = 512,
                    mxu_dtype=None):
    """x:(B,M,I)  h,c:(B,M,H)  w:(I,4H)  u:(H,4H)  b:(4H,) -> (h_new, c_new).

    Gate order along the 4H axis is [i, f, o, g] (matching the reference
    module).  `mxu_dtype=jnp.bfloat16` casts only the matmul operands for the
    fast MXU path on v6e/v7x (f32 accumulation and gate math preserved).
    """
    B, M, I = x.shape
    H = h.shape[-1]
    R = B * M
    dtype = x.dtype

    # Feature axes padded to 128 lanes.
    Ip = _round_up(I, 128)
    Hp = _round_up(H, 128)

    # Row tile: bound padding waste to < one tile; 16-sublane for 16-bit dtypes.
    sub = 16 if jnp.dtype(dtype).itemsize == 2 else 8
    n_row = max(1, _cdiv(R, row_tile))
    rt = _round_up(_cdiv(R, n_row), sub)
    Rp = n_row * rt

    # Hidden-column tile (second grid axis): bounds resident weight VMEM.
    ct = _pick_col_tile(Hp, col_tile)
    n_col = Hp // ct

    # Flatten (B, M) -> rows and zero-pad rows / feature columns.  x and h are
    # kept as SEPARATE inputs (no [x|h] concat round trip through HBM).
    x2 = jnp.pad(x.reshape(R, I), ((0, Rp - R), (0, Ip - I)))
    h2 = jnp.pad(h.reshape(R, H), ((0, Rp - R), (0, Hp - H)))
    c2 = jnp.pad(c.reshape(R, H), ((0, Rp - R), (0, Hp - H)))

    # Per-gate weight layout (4, K, Hp) with lane-aligned column tiles.
    w_p = jnp.pad(jnp.transpose(w.reshape(I, 4, H), (1, 0, 2)),
                  ((0, 0), (0, Ip - I), (0, Hp - H)))          # (4, Ip, Hp)
    u_p = jnp.pad(jnp.transpose(u.reshape(H, 4, H), (1, 0, 2)),
                  ((0, 0), (0, Hp - H), (0, Hp - H)))          # (4, Hp, Hp)
    b_p = jnp.pad(b.reshape(4, H), ((0, 0), (0, Hp - H)))       # (4, Hp)

    if mxu_dtype is not None:
        x2 = x2.astype(mxu_dtype)
        h2 = h2.astype(mxu_dtype)
        w_p = w_p.astype(mxu_dtype)
        u_p = u_p.astype(mxu_dtype)

    # Grid: (hidden-column tiles, row tiles).  Weights only change on the
    # outer axis, so they are fetched once per column tile; both axes are
    # fully parallel (distinct output blocks) -> megacore-shardable.
    grid = (n_col, n_row)

    h_new, c_new = pl.pallas_call(
        _lstm_cell_kernel,
        out_shape=(
            jax.ShapeDtypeStruct((Rp, Hp), dtype),
            jax.ShapeDtypeStruct((Rp, Hp), dtype),
        ),
        grid_spec=pltpu.PrefetchScalarGridSpec(
            num_scalar_prefetch=0,
            grid=grid,
            in_specs=[
                pl.BlockSpec((rt, Ip), lambda j, r: (r, 0)),        # x tile
                pl.BlockSpec((rt, Hp), lambda j, r: (r, 0)),        # h tile
                pl.BlockSpec((rt, ct), lambda j, r: (r, j)),        # c tile
                pl.BlockSpec((4, Ip, ct), lambda j, r: (0, 0, j),   # W (per gate)
                             pipeline_mode=pl.Buffered(1)),
                pl.BlockSpec((4, Hp, ct), lambda j, r: (0, 0, j),   # U (per gate)
                             pipeline_mode=pl.Buffered(1)),
                pl.BlockSpec((4, ct), lambda j, r: (0, j),          # bias
                             pipeline_mode=pl.Buffered(1)),
            ],
            out_specs=[
                pl.BlockSpec((rt, ct), lambda j, r: (r, j)),        # h_new
                pl.BlockSpec((rt, ct), lambda j, r: (r, j)),        # c_new
            ],
        ),
        compiler_params=pltpu.CompilerParams(
            dimension_semantics=("parallel", "parallel"),
            vmem_limit_bytes=_VMEM_LIMIT_BYTES,
        ),
    )(x2, h2, c2, w_p, u_p, b_p)

    h_new = h_new[:R, :H].reshape(B, M, H)
    c_new = c_new[:R, :H].reshape(B, M, H)
    return h_new, c_new


def _reference(x, h, c, w, u, b):
    """Pure-JAX reference mirroring the PyTorch forward (gate order i,f,o,g)."""
    H = h.shape[-1]
    gates = (jnp.einsum("bmi,ih->bmh", x, w)
             + jnp.einsum("bmh,hk->bmk", h, u)
             + b)
    i = jax.nn.sigmoid(gates[..., 0 * H:1 * H])
    f = jax.nn.sigmoid(gates[..., 1 * H:2 * H])
    o = jax.nn.sigmoid(gates[..., 2 * H:3 * H])
    g = jnp.tanh(gates[..., 3 * H:4 * H])
    c_new = f * c + i * g
    h_new = o * jnp.tanh(c_new)
    return h_new, c_new


if __name__ == "__main__":
    # Small shapes consistent with the module: x (batch, nodes, input_size).
    B, NODES, INPUT, HIDDEN = 2, 16, 8, 32
    dtype = jnp.float32

    key = jax.random.PRNGKey(0)
    kx, kh, kc, kw, ku, kb = jax.random.split(key, 6)

    x = jax.random.normal(kx, (B, NODES, INPUT), dtype)
    h0 = jax.random.normal(kh, (B, NODES, HIDDEN), dtype)
    c0 = jax.random.normal(kc, (B, NODES, HIDDEN), dtype)

    # Deterministic parameter init (gate order [i, f, o, g], concatenated).
    w_all = 0.1 * jax.random.normal(kw, (INPUT, 4 * HIDDEN), dtype)
    u_all = 0.1 * jax.random.normal(ku, (HIDDEN, 4 * HIDDEN), dtype)
    b_all = 0.1 * jax.random.normal(kb, (4 * HIDDEN,), dtype)

    h_ref, c_ref = _reference(x, h0, c0, w_all, u_all, b_all)

    # f32 path.
    h_new, c_new = graph_lstm_cell(x, h0, c0, w_all, u_all, b_all)
    jax.block_until_ready((h_new, c_new))
    assert jnp.allclose(h_new, h_ref, atol=2e-5, rtol=2e-5)
    assert jnp.allclose(c_new, c_ref, atol=2e-5, rtol=2e-5)

    # Zero-initial-state path (state=None in the PyTorch module).
    h_z, c_z = graph_lstm_cell(x, jnp.zeros_like(h0), jnp.zeros_like(c0),
                               w_all, u_all, b_all)
    jax.block_until_ready((h_z, c_z))
    h_zr, c_zr = _reference(x, jnp.zeros_like(h0), jnp.zeros_like(c0),
                            w_all, u_all, b_all)
    assert jnp.allclose(h_z, h_zr, atol=2e-5, rtol=2e-5)
    assert jnp.allclose(c_z, c_zr, atol=2e-5, rtol=2e-5)

    # bf16 MXU-operand path (v6e/v7x fast path); f32 accumulation preserved.
    h_b, c_b = graph_lstm_cell(x, h0, c0, w_all, u_all, b_all,
                               mxu_dtype=jnp.bfloat16)
    jax.block_until_ready((h_b, c_b))
    assert jnp.allclose(h_b, h_ref, atol=5e-2, rtol=5e-2)
    assert jnp.allclose(c_b, c_ref, atol=5e-2, rtol=5e-2)

    print("KERNEL_OK")
</pallas_src>

<mosaic_0001>
module attributes {stable_mosaic.version = 11 : i64} {
  func.func @_lstm_cell_kernel(%arg0: i32, %arg1: i32, %arg2: memref<32x128xf32, #tpu.memory_space<vmem>>, %arg3: memref<32x128xf32, #tpu.memory_space<vmem>>, %arg4: memref<32x128xf32, #tpu.memory_space<vmem>>, %arg5: memref<4x128x128xf32, #tpu.memory_space<vmem>>, %arg6: memref<4x128x128xf32, #tpu.memory_space<vmem>>, %arg7: memref<4x128xf32, #tpu.memory_space<vmem>>, %arg8: memref<32x128xf32, #tpu.memory_space<vmem>>, %arg9: memref<32x128xf32, #tpu.memory_space<vmem>>) attributes {dimension_semantics = [#tpu.dimension_semantics<parallel>, #tpu.dimension_semantics<parallel>], iteration_bounds = array<i64: 1, 1>, scalar_prefetch = 0 : i64, scratch_operands = 0 : i64, tpu.core_type = #tpu.core_type<tc>, window_params = [{transform_indices = @transform_0, window_bounds = array<i64: 32, 128>}, {transform_indices = @transform_1, window_bounds = array<i64: 32, 128>}, {transform_indices = @transform_2, window_bounds = array<i64: 32, 128>}, {pipeline_mode = #tpu.pipeline_mode<synchronous>, transform_indices = @transform_3, window_bounds = array<i64: 4, 128, 128>}, {pipeline_mode = #tpu.pipeline_mode<synchronous>, transform_indices = @transform_4, window_bounds = array<i64: 4, 128, 128>}, {pipeline_mode = #tpu.pipeline_mode<synchronous>, transform_indices = @transform_5, window_bounds = array<i64: 4, 128>}, {transform_indices = @transform_6, window_bounds = array<i64: 32, 128>}, {transform_indices = @transform_7, window_bounds = array<i64: 32, 128>}]} {
    %c0 = arith.constant 0 : index
    %c0_0 = arith.constant 0 : index
    %0 = vector.load %arg2[%c0, %c0_0] : memref<32x128xf32, #tpu.memory_space<vmem>>, vector<32x128xf32>
    %c0_1 = arith.constant 0 : index
    %c0_2 = arith.constant 0 : index
    %1 = vector.load %arg3[%c0_1, %c0_2] : memref<32x128xf32, #tpu.memory_space<vmem>>, vector<32x128xf32>
    %c0_3 = arith.constant 0 : index
    %c0_4 = arith.constant 0 : index
    %c0_5 = arith.constant 0 : index
    %2 = vector.load %arg5[%c0_3, %c0_4, %c0_5] : memref<4x128x128xf32, #tpu.memory_space<vmem>>, vector<1x128x128xf32>
    %3 = vector.shape_cast %2 : vector<1x128x128xf32> to vector<128x128xf32>
    %cst = arith.constant dense<0.000000e+00> : vector<32x128xf32>
    %4 = tpu.matmul %0, %3, %cst {dimension_numbers = #tpu.dot_dimension_numbers<[1], [0], [0], [1], [0, 0, 1, 1], [], []>} : vector<32x128xf32>, vector<128x128xf32>, vector<32x128xf32> -> vector<32x128xf32>
    %c0_6 = arith.constant 0 : index
    %c0_7 = arith.constant 0 : index
    %c0_8 = arith.constant 0 : index
    %5 = vector.load %arg6[%c0_6, %c0_7, %c0_8] : memref<4x128x128xf32, #tpu.memory_space<vmem>>, vector<1x128x128xf32>
    %6 = vector.shape_cast %5 : vector<1x128x128xf32> to vector<128x128xf32>
    %cst_9 = arith.constant dense<0.000000e+00> : vector<32x128xf32>
    %7 = tpu.matmul %1, %6, %cst_9 {dimension_numbers = #tpu.dot_dimension_numbers<[1], [0], [0], [1], [0, 0, 1, 1], [], []>} : vector<32x128xf32>, vector<128x128xf32>, vector<32x128xf32> -> vector<32x128xf32>
    %8 = arith.addf %4, %7 : vector<32x128xf32>
    %c0_10 = arith.constant 0 : index
    %c0_11 = arith.constant 0 : index
    %9 = vector.load %arg7[%c0_10, %c0_11] : memref<4x128xf32, #tpu.memory_space<vmem>>, vector<1x128xf32>
    %10 = vector.broadcast %9 : vector<1x128xf32> to vector<32x128xf32>
    %11 = arith.addf %8, %10 : vector<32x128xf32>
    %12 = arith.negf %11 : vector<32x128xf32>
    %13 = math.exp %12 : vector<32x128xf32>
    %cst_12 = arith.constant 1.000000e+00 : f32
    %14 = vector.broadcast %cst_12 : f32 to vector<32x128xf32>
    %15 = arith.addf %14, %13 : vector<32x128xf32>
    %16 = arith.divf %14, %15 : vector<32x128xf32>
    %c1 = arith.constant 1 : index
    %c0_13 = arith.constant 0 : index
    %c0_14 = arith.constant 0 : index
    %17 = vector.load %arg5[%c1, %c0_13, %c0_14] : memref<4x128x128xf32, #tpu.memory_space<vmem>>, vector<1x128x128xf32>
    %18 = vector.shape_cast %17 : vector<1x128x128xf32> to vector<128x128xf32>
    %cst_15 = arith.constant dense<0.000000e+00> : vector<32x128xf32>
    %19 = tpu.matmul %0, %18, %cst_15 {dimension_numbers = #tpu.dot_dimension_numbers<[1], [0], [0], [1], [0, 0, 1, 1], [], []>} : vector<32x128xf32>, vector<128x128xf32>, vector<32x128xf32> -> vector<32x128xf32>
    %c1_16 = arith.constant 1 : index
    %c0_17 = arith.constant 0 : index
    %c0_18 = arith.constant 0 : index
    %20 = vector.load %arg6[%c1_16, %c0_17, %c0_18] : memref<4x128x128xf32, #tpu.memory_space<vmem>>, vector<1x128x128xf32>
    %21 = vector.shape_cast %20 : vector<1x128x128xf32> to vector<128x128xf32>
    %cst_19 = arith.constant dense<0.000000e+00> : vector<32x128xf32>
    %22 = tpu.matmul %1, %21, %cst_19 {dimension_numbers = #tpu.dot_dimension_numbers<[1], [0], [0], [1], [0, 0, 1, 1], [], []>} : vector<32x128xf32>, vector<128x128xf32>, vector<32x128xf32> -> vector<32x128xf32>
    %23 = arith.addf %19, %22 : vector<32x128xf32>
    %c1_20 = arith.constant 1 : index
    %c0_21 = arith.constant 0 : index
    %24 = vector.load %arg7[%c1_20, %c0_21] : memref<4x128xf32, #tpu.memory_space<vmem>>, vector<1x128xf32>
    %25 = vector.broadcast %24 : vector<1x128xf32> to vector<32x128xf32>
    %26 = arith.addf %23, %25 : vector<32x128xf32>
    %27 = arith.negf %26 : vector<32x128xf32>
    %28 = math.exp %27 : vector<32x128xf32>
    %cst_22 = arith.constant 1.000000e+00 : f32
    %29 = vector.broadcast %cst_22 : f32 to vector<32x128xf32>
    %30 = arith.addf %29, %28 : vector<32x128xf32>
    %31 = arith.divf %29, %30 : vector<32x128xf32>
    %c2 = arith.constant 2 : index
    %c0_23 = arith.constant 0 : index
    %c0_24 = arith.constant 0 : index
    %32 = vector.load %arg5[%c2, %c0_23, %c0_24] : memref<4x128x128xf32, #tpu.memory_space<vmem>>, vector<1x128x128xf32>
    %33 = vector.shape_cast %32 : vector<1x128x128xf32> to vector<128x128xf32>
    %cst_25 = arith.constant dense<0.000000e+00> : vector<32x128xf32>
    %34 = tpu.matmul %0, %33, %cst_25 {dimension_numbers = #tpu.dot_dimension_numbers<[1], [0], [0], [1], [0, 0, 1, 1], [], []>} : vector<32x128xf32>, vector<128x128xf32>, vector<32x128xf32> -> vector<32x128xf32>
    %c2_26 = arith.constant 2 : index
    %c0_27 = arith.constant 0 : index
    %c0_28 = arith.constant 0 : index
    %35 = vector.load %arg6[%c2_26, %c0_27, %c0_28] : memref<4x128x128xf32, #tpu.memory_space<vmem>>, vector<1x128x128xf32>
    %36 = vector.shape_cast %35 : vector<1x128x128xf32> to vector<128x128xf32>
    %cst_29 = arith.constant dense<0.000000e+00> : vector<32x128xf32>
    %37 = tpu.matmul %1, %36, %cst_29 {dimension_numbers = #tpu.dot_dimension_numbers<[1], [0], [0], [1], [0, 0, 1, 1], [], []>} : vector<32x128xf32>, vector<128x128xf32>, vector<32x128xf32> -> vector<32x128xf32>
    %38 = arith.addf %34, %37 : vector<32x128xf32>
    %c2_30 = arith.constant 2 : index
    %c0_31 = arith.constant 0 : index
    %39 = vector.load %arg7[%c2_30, %c0_31] : memref<4x128xf32, #tpu.memory_space<vmem>>, vector<1x128xf32>
    %40 = vector.broadcast %39 : vector<1x128xf32> to vector<32x128xf32>
    %41 = arith.addf %38, %40 : vector<32x128xf32>
    %42 = arith.negf %41 : vector<32x128xf32>
    %43 = math.exp %42 : vector<32x128xf32>
    %cst_32 = arith.constant 1.000000e+00 : f32
    %44 = vector.broadcast %cst_32 : f32 to vector<32x128xf32>
    %45 = arith.addf %44, %43 : vector<32x128xf32>
    %46 = arith.divf %44, %45 : vector<32x128xf32>
    %c3 = arith.constant 3 : index
    %c0_33 = arith.constant 0 : index
    %c0_34 = arith.constant 0 : index
    %47 = vector.load %arg5[%c3, %c0_33, %c0_34] : memref<4x128x128xf32, #tpu.memory_space<vmem>>, vector<1x128x128xf32>
    %48 = vector.shape_cast %47 : vector<1x128x128xf32> to vector<128x128xf32>
    %cst_35 = arith.constant dense<0.000000e+00> : vector<32x128xf32>
    %49 = tpu.matmul %0, %48, %cst_35 {dimension_numbers = #tpu.dot_dimension_numbers<[1], [0], [0], [1], [0, 0, 1, 1], [], []>} : vector<32x128xf32>, vector<128x128xf32>, vector<32x128xf32> -> vector<32x128xf32>
    %c3_36 = arith.constant 3 : index
    %c0_37 = arith.constant 0 : index
    %c0_38 = arith.constant 0 : index
    %50 = vector.load %arg6[%c3_36, %c0_37, %c0_38] : memref<4x128x128xf32, #tpu.memory_space<vmem>>, vector<1x128x128xf32>
    %51 = vector.shape_cast %50 : vector<1x128x128xf32> to vector<128x128xf32>
    %cst_39 = arith.constant dense<0.000000e+00> : vector<32x128xf32>
    %52 = tpu.matmul %1, %51, %cst_39 {dimension_numbers = #tpu.dot_dimension_numbers<[1], [0], [0], [1], [0, 0, 1, 1], [], []>} : vector<32x128xf32>, vector<128x128xf32>, vector<32x128xf32> -> vector<32x128xf32>
    %53 = arith.addf %49, %52 : vector<32x128xf32>
    %c3_40 = arith.constant 3 : index
    %c0_41 = arith.constant 0 : index
    %54 = vector.load %arg7[%c3_40, %c0_41] : memref<4x128xf32, #tpu.memory_space<vmem>>, vector<1x128xf32>
    %55 = vector.broadcast %54 : vector<1x128xf32> to vector<32x128xf32>
    %56 = arith.addf %53, %55 : vector<32x128xf32>
    %57 = math.tanh %56 : vector<32x128xf32>
    %c0_42 = arith.constant 0 : index
    %c0_43 = arith.constant 0 : index
    %58 = vector.load %arg4[%c0_42, %c0_43] : memref<32x128xf32, #tpu.memory_space<vmem>>, vector<32x128xf32>
    %59 = arith.mulf %31, %58 : vector<32x128xf32>
    %60 = arith.mulf %16, %57 : vector<32x128xf32>
    %61 = arith.addf %59, %60 : vector<32x128xf32>
    %62 = math.tanh %61 : vector<32x128xf32>
    %63 = arith.mulf %46, %62 : vector<32x128xf32>
    %c0_44 = arith.constant 0 : index
    %c0_45 = arith.constant 0 : index
    %64 = vector.load %arg9[%c0_44, %c0_45] : memref<32x128xf32, #tpu.memory_space<vmem>>, vector<32x128xf32>
    tpu.vector_store %arg9[%c0_44, %c0_45], %61 {strides = array<i32>} : memref<32x128xf32, #tpu.memory_space<vmem>>, vector<32x128xf32>,
    %c0_46 = arith.constant 0 : index
    %c0_47 = arith.constant 0 : index
    %65 = vector.load %arg8[%c0_46, %c0_47] : memref<32x128xf32, #tpu.memory_space<vmem>>, vector<32x128xf32>
    tpu.vector_store %arg8[%c0_46, %c0_47], %63 {strides = array<i32>} : memref<32x128xf32, #tpu.memory_space<vmem>>, vector<32x128xf32>,
    return
  }
  func.func @transform_0(%arg0: i32, %arg1: i32) -> (i32, i32) {
    %c0_i32 = arith.constant 0 : i32
    %c0_i32_0 = arith.constant 0 : i32
    return %arg1, %c0_i32 : i32, i32
  }
  func.func @transform_1(%arg0: i32, %arg1: i32) -> (i32, i32) {
    %c0_i32 = arith.constant 0 : i32
    %c0_i32_0 = arith.constant 0 : i32
    return %arg1, %c0_i32 : i32, i32
  }
  func.func @transform_2(%arg0: i32, %arg1: i32) -> (i32, i32) {
    %c0_i32 = arith.constant 0 : i32
    return %arg1, %arg0 : i32, i32
  }
  func.func @transform_3(%arg0: i32, %arg1: i32) -> (i32, i32, i32) {
    %c0_i32 = arith.constant 0 : i32
    %c0_i32_0 = arith.constant 0 : i32
    %c0_i32_1 = arith.constant 0 : i32
    return %c0_i32, %c0_i32_0, %arg0 : i32, i32, i32
  }
  func.func @transform_4(%arg0: i32, %arg1: i32) -> (i32, i32, i32) {
    %c0_i32 = arith.constant 0 : i32
    %c0_i32_0 = arith.constant 0 : i32
    %c0_i32_1 = arith.constant 0 : i32
    return %c0_i32, %c0_i32_0, %arg0 : i32, i32, i32
  }
  func.func @transform_5(%arg0: i32, %arg1: i32) -> (i32, i32) {
    %c0_i32 = arith.constant 0 : i32
    %c0_i32_0 = arith.constant 0 : i32
    return %c0_i32, %arg0 : i32, i32
  }
  func.func @transform_6(%arg0: i32, %arg1: i32) -> (i32, i32) {
    %c0_i32 = arith.constant 0 : i32
    return %arg1, %arg0 : i32, i32
  }
  func.func @transform_7(%arg0: i32, %arg1: i32) -> (i32, i32) {
    %c0_i32 = arith.constant 0 : i32
    return %arg1, %arg0 : i32, i32
  }
}

</mosaic_0001>

<llo_original>
// kernel: graph_lstm_cell.1
$region0: #{graph_lstm_cell.1}
  #allocation0 [shape = 'u32[]', space=smem, size = 0x4, offset = 0x4, fixed_abs, tag = 'smem constant byte address 0x4 - core index']
  #allocation1 [shape = 'u32[144,128]{1,0:T(1,128)}', space=vmem, size = 0x12000, scoped, tag = 'internal scratch']
  %s0 = inlined_call_operand.vmem [shape: f32[32,128], index: 0, kind: input, shape index: {}]
  %s1 = inlined_call_operand.vmem [shape: f32[32,128], index: 1, kind: input, shape index: {}]
  %s2 = inlined_call_operand.vmem [shape: f32[32,128], index: 2, kind: input, shape index: {}]
  %s3 = inlined_call_operand.vmem [shape: f32[4,128,128], index: 3, kind: input, shape index: {}]
  %s4 = inlined_call_operand.vmem [shape: f32[4,128,128], index: 4, kind: input, shape index: {}]
  %s5 = inlined_call_operand.vmem [shape: f32[4,128], index: 5, kind: input, shape index: {}]
  %s6 = inlined_call_operand.hbm [shape: f32[32,128], index: 6, kind: output, shape index: {0}]
  %s7 = inlined_call_operand.hbm [shape: f32[32,128], index: 7, kind: output, shape index: {1}]
  %8 = xla_tuple %s6, %s7
  %s9 = sld [smem:[#allocation0]]
  $region42: #{graph_lstm_cell.1} parent=0
    _
  %s11 = ssub.s32 1, %s9
  %s12 = scalar_select 0, %s11, %s9
  $region1: #{graph_lstm_cell.1} parent=0
    #allocation2 [shape = 'u8[16384]{0}', space=vmem, size = 0x4000, scoped, tag = 'output window, operand 0, single buffered']
    #allocation3 [shape = 's32[1]{0}', space=sflag, size = 0x4, scoped, tag = 'scoped memory for graph_lstm_cell.1']
    #allocation4 [shape = 'u8[16384]{0}', space=vmem, size = 0x4000, scoped, tag = 'output window, operand 1, single buffered']
    #allocation5 [shape = 's32[1]{0}', space=sflag, size = 0x4, scoped, tag = 'scoped memory for graph_lstm_cell.1']
    %13 = vsyncpa [#allocation3], 0
    %14 = vsyncpa [#allocation5], 0
    // Predicated region
    $region2: #{graph_lstm_cell.1} parent=1 // pred_check
      _
    $region3: #{graph_lstm_cell.1} parent=1 // pred_check_branch
      %16 = sbr.rel (0) target = $region5
    $region4: #{graph_lstm_cell.1} parent=1 // pred_region
      _
    $region5: #{graph_lstm_cell.1} parent=1 // pred_fallthru
      _
    // Predicated region
    $region6: #{graph_lstm_cell.1} parent=1 // pred_check
      _
    $region7: #{graph_lstm_cell.1} parent=1 // pred_check_branch
      %18 = sbr.rel (0) target = $region9
    $region8: #{graph_lstm_cell.1} parent=1 // pred_region
      _
    $region9: #{graph_lstm_cell.1} parent=1 // pred_fallthru
      _
    // Predicated region
    $region10: #{graph_lstm_cell.1} parent=1 // pred_check
      _
    $region11: #{graph_lstm_cell.1} parent=1 // pred_check_branch
      %20 = sbr.rel (0) target = $region13
    $region12: #{graph_lstm_cell.1} parent=1 // pred_region
      _
    $region13: #{graph_lstm_cell.1} parent=1 // pred_fallthru
      _
    // Predicated region
    $region14: #{graph_lstm_cell.1} parent=1 // pred_check
      _
    $region15: #{graph_lstm_cell.1} parent=1 // pred_check_branch
      %22 = sbr.rel (0) target = $region17
    $region16: #{graph_lstm_cell.1} parent=1 // pred_region
      _
    $region17: #{graph_lstm_cell.1} parent=1 // pred_fallthru
      _
    // Predicated region
    $region18: #{graph_lstm_cell.1} parent=1 // pred_check
      _
    $region19: #{graph_lstm_cell.1} parent=1 // pred_check_branch
      %24 = sbr.rel (0) target = $region21
    $region20: #{graph_lstm_cell.1} parent=1 // pred_region
      _
    $region21: #{graph_lstm_cell.1} parent=1 // pred_fallthru
      _
    // Predicated region
    $region22: #{graph_lstm_cell.1} parent=1 // pred_check
      _
    $region23: #{graph_lstm_cell.1} parent=1 // pred_check_branch
      %26 = sbr.rel (0) target = $region25
    $region24: #{graph_lstm_cell.1} parent=1 // pred_region
      _
    $region25: #{graph_lstm_cell.1} parent=1 // pred_fallthru
      _
    %v27 = vld [vmem:[%s0] sm:$0xff]
    %v28 = vld [vmem:[%s0 + $0x8] sm:$0xff]
    %v29 = vld [vmem:[%s0 + $0x10] sm:$0xff]
    %v30 = vld [vmem:[%s0 + $0x18] sm:$0xff]
    %v31 = vld [vmem:[%s1] sm:$0xff]
    %v32 = vld [vmem:[%s1 + $0x8] sm:$0xff]
    %v33 = vld [vmem:[%s1 + $0x10] sm:$0xff]
    %v34 = vld [vmem:[%s1 + $0x18] sm:$0xff]
    %v35 = vld [vmem:[%s3] sm:$0xff]
    %v36 = vld [vmem:[%s3 + $0x8] sm:$0xff]
    %v37 = vld [vmem:[%s3 + $0x10] sm:$0xff]
    %v38 = vld [vmem:[%s3 + $0x18] sm:$0xff]
    %v39 = vld [vmem:[%s3 + $0x20] sm:$0xff]
    %v40 = vld [vmem:[%s3 + $0x28] sm:$0xff]
    %v41 = vld [vmem:[%s3 + $0x30] sm:$0xff]
    %v42 = vld [vmem:[%s3 + $0x38] sm:$0xff]
    %v43 = vld [vmem:[%s3 + $0x40] sm:$0xff]
    %v44 = vld [vmem:[%s3 + $0x48] sm:$0xff]
    %v45 = vld [vmem:[%s3 + $0x50] sm:$0xff]
    %v46 = vld [vmem:[%s3 + $0x58] sm:$0xff]
    %v47 = vld [vmem:[%s3 + $0x60] sm:$0xff]
    %v48 = vld [vmem:[%s3 + $0x68] sm:$0xff]
    %v49 = vld [vmem:[%s3 + $0x70] sm:$0xff]
    %v50 = vld [vmem:[%s3 + $0x78] sm:$0xff]
    %v51 = vld [vmem:[%s4] sm:$0xff]
    %v52 = vld [vmem:[%s4 + $0x8] sm:$0xff]
    %v53 = vld [vmem:[%s4 + $0x10] sm:$0xff]
    %v54 = vld [vmem:[%s4 + $0x18] sm:$0xff]
    %v55 = vld [vmem:[%s4 + $0x20] sm:$0xff]
    %v56 = vld [vmem:[%s4 + $0x28] sm:$0xff]
    %v57 = vld [vmem:[%s4 + $0x30] sm:$0xff]
    %v58 = vld [vmem:[%s4 + $0x38] sm:$0xff]
    %v59 = vld [vmem:[%s4 + $0x40] sm:$0xff]
    %v60 = vld [vmem:[%s4 + $0x48] sm:$0xff]
    %v61 = vld [vmem:[%s4 + $0x50] sm:$0xff]
    %v62 = vld [vmem:[%s4 + $0x58] sm:$0xff]
    %v63 = vld [vmem:[%s4 + $0x60] sm:$0xff]
    %v64 = vld [vmem:[%s4 + $0x68] sm:$0xff]
    %v65 = vld [vmem:[%s4 + $0x70] sm:$0xff]
    %v66 = vld [vmem:[%s4 + $0x78] sm:$0xff]
    %67 = vmatprep.subr.mxu0 0.0
    %68 = vmatpush1.msra.mxu0 %v51
    %69 = vmatprep.subr.mxu0 0.0
    %70 = vmatpush1.msra.mxu0 %v52
    %71 = vmatprep.subr.mxu0 0.0
    %72 = vmatpush1.msra.mxu0 %v53
    %73 = vmatprep.subr.mxu0 0.0
    %74 = vmatpush1.msra.mxu0 %v54
    %75 = vmatprep.subr.mxu0 0.0
    %76 = vmatpush1.msra.mxu0 %v55
    %77 = vmatprep.subr.mxu0 0.0
    %78 = vmatpush1.msra.mxu0 %v56
    %79 = vmatprep.subr.mxu0 0.0
    %80 = vmatpush1.msra.mxu0 %v57
    %81 = vmatprep.subr.mxu0 0.0
    %82 = vmatpush1.msra.mxu0 %v58
    %83 = vmatprep.subr.mxu0 0.0
    %84 = vmatpush1.msra.mxu0 %v59
    %85 = vmatprep.subr.mxu0 0.0
    %86 = vmatpush1.msra.mxu0 %v60
    %87 = vmatprep.subr.mxu0 0.0
    %88 = vmatpush1.msra.mxu0 %v61
    %89 = vmatprep.subr.mxu0 0.0
    %90 = vmatpush1.msra.mxu0 %v62
    %91 = vmatprep.subr.mxu0 0.0
    %92 = vmatpush1.msra.mxu0 %v63
    %93 = vmatprep.subr.mxu0 0.0
    %94 = vmatpush1.msra.mxu0 %v64
    %95 = vmatprep.subr.mxu0 0.0
    %96 = vmatpush1.msra.mxu0 %v65
    %97 = vmatprep.subr.mxu0 0.0
    %98 = vmatpush1.msra.mxu0 %v66
    %99 = vmatprep.subr.mxu0 0.0
    %100 = vmatpush1.msra.mxu0 0.0
    %101 = vmatprep.subr.mxu0 0.0
    %102 = vmatpush1.msra.mxu0 0.0
    %103 = vmatprep.subr.mxu0 0.0
    %104 = vmatpush1.msra.mxu0 0.0
    %105 = vmatprep.subr.mxu0 0.0
    %106 = vmatpush1.msra.mxu0 0.0
    %107 = vmatprep.subr.mxu0 0.0
    %108 = vmatpush1.msra.mxu0 0.0
    %109 = vmatprep.subr.mxu0 0.0
    %110 = vmatpush1.msra.mxu0 0.0
    %111 = vmatprep.subr.mxu0 0.0
    %112 = vmatpush1.msra.mxu0 0.0
    %113 = vmatprep.subr.mxu0 0.0
    %114 = vmatpush1.msra.mxu0 0.0
    %115 = vmatprep.subr.mxu0 0.0
    %116 = vmatpush1.msra.mxu0 0.0
    %117 = vmatprep.subr.mxu0 0.0
    %118 = vmatpush1.msra.mxu0 0.0
    %119 = vmatprep.subr.mxu0 0.0
    %120 = vmatpush1.msra.mxu0 0.0
    %121 = vmatprep.subr.mxu0 0.0
    %122 = vmatpush1.msra.mxu0 0.0
    %123 = vmatprep.subr.mxu0 0.0
    %124 = vmatpush1.msra.mxu0 0.0
    %125 = vmatprep.subr.mxu0 0.0
    %126 = vmatpush1.msra.mxu0 0.0
    %127 = vmatprep.subr.mxu0 0.0
    %128 = vmatpush1.msra.mxu0 0.0
    %129 = vmatprep.subr.mxu0 0.0
    %130 = vmatpush1.msra.mxu0 0.0
    %131 = vmatprep.mubr.f32.mxu0 0.0
    %132 = vmatmul.mubr.f32.gmra.mrb[0].mxu0 %v31
    %v133 = vpop.f32.mrb[0].mxu0
    %v134 = vadd.f32 0.0, %v133
    %v135 = vpop.f32.mrb[0].mxu0
    %136 = vmatprep.mubr.f32.mxu0 0.0
    %137 = vmatmul.mubr.f32.gmra.mrb[0].mxu0 %v32
    %v138 = vpop.f32.mrb[0].mxu0
    %v139 = vadd.f32 0.0, %v138
    %v140 = vpop.f32.mrb[0].mxu0
    %141 = vmatprep.mubr.f32.mxu0 0.0
    %142 = vmatmul.mubr.f32.gmra.mrb[0].mxu0 %v33
    %v143 = vpop.f32.mrb[0].mxu0
    %v144 = vadd.f32 0.0, %v143
    %v145 = vpop.f32.mrb[0].mxu0
    %146 = vmatprep.mubr.f32.mxu0 0.0
    %147 = vmatmul.mubr.f32.gmra.mrb[0].mxu0 %v34
    %v148 = vpop.f32.mrb[0].mxu0
    %v149 = vadd.f32 0.0, %v148
    %v150 = vpop.f32.mrb[0].mxu0
    %151 = vdwg.mxu0
    %152 = vmatprep.subr.mxu0 0.0
    %153 = vmatpush1.msra.mxu0 %v35
    %154 = vmatprep.subr.mxu0 0.0
    %155 = vmatpush1.msra.mxu0 %v36
    %156 = vmatprep.subr.mxu0 0.0
    %157 = vmatpush1.msra.mxu0 %v37
    %158 = vmatprep.subr.mxu0 0.0
    %159 = vmatpush1.msra.mxu0 %v38
    %160 = vmatprep.subr.mxu0 0.0
    %161 = vmatpush1.msra.mxu0 %v39
    %162 = vmatprep.subr.mxu0 0.0
    %163 = vmatpush1.msra.mxu0 %v40
    %164 = vmatprep.subr.mxu0 0.0
    %165 = vmatpush1.msra.mxu0 %v41
    %166 = vmatprep.subr.mxu0 0.0
    %167 = vmatpush1.msra.mxu0 %v42
    %168 = vmatprep.subr.mxu0 0.0
    %169 = vmatpush1.msra.mxu0 %v43
    %170 = vmatprep.subr.mxu0 0.0
    %171 = vmatpush1.msra.mxu0 %v44
    %172 = vmatprep.subr.mxu0 0.0
    %173 = vmatpush1.msra.mxu0 %v45
    %174 = vmatprep.subr.mxu0 0.0
    %175 = vmatpush1.msra.mxu0 %v46
    %176 = vmatprep.subr.mxu0 0.0
    %177 = vmatpush1.msra.mxu0 %v47
    %178 = vmatprep.subr.mxu0 0.0
    %179 = vmatpush1.msra.mxu0 %v48
    %180 = vmatprep.subr.mxu0 0.0
    %181 = vmatpush1.msra.mxu0 %v49
    %182 = vmatprep.subr.mxu0 0.0
    %183 = vmatpush1.msra.mxu0 %v50
    %184 = vmatprep.subr.mxu0 0.0
    %185 = vmatpush1.msra.mxu0 0.0
    %186 = vmatprep.subr.mxu0 0.0
    %187 = vmatpush1.msra.mxu0 0.0
    %188 = vmatprep.subr.mxu0 0.0
    %189 = vmatpush1.msra.mxu0 0.0
    %190 = vmatprep.subr.mxu0 0.0
    %191 = vmatpush1.msra.mxu0 0.0
    %192 = vmatprep.subr.mxu0 0.0
    %193 = vmatpush1.msra.mxu0 0.0
    %194 = vmatprep.subr.mxu0 0.0
    %195 = vmatpush1.msra.mxu0 0.0
    %196 = vmatprep.subr.mxu0 0.0
    %197 = vmatpush1.msra.mxu0 0.0
    %198 = vmatprep.subr.mxu0 0.0
    %199 = vmatpush1.msra.mxu0 0.0
    %200 = vmatprep.subr.mxu0 0.0
    %201 = vmatpush1.msra.mxu0 0.0
    %202 = vmatprep.subr.mxu0 0.0
    %203 = vmatpush1.msra.mxu0 0.0
    %204 = vmatprep.subr.mxu0 0.0
    %205 = vmatpush1.msra.mxu0 0.0
    %206 = vmatprep.subr.mxu0 0.0
    %207 = vmatpush1.msra.mxu0 0.0
    %208 = vmatprep.subr.mxu0 0.0
    %209 = vmatpush1.msra.mxu0 0.0
    %210 = vmatprep.subr.mxu0 0.0
    %211 = vmatpush1.msra.mxu0 0.0
    %212 = vmatprep.subr.mxu0 0.0
    %213 = vmatpush1.msra.mxu0 0.0
    %214 = vmatprep.subr.mxu0 0.0
    %215 = vmatpush1.msra.mxu0 0.0
    %216 = vmatprep.mubr.f32.mxu0 0.0
    %217 = vmatmul.mubr.f32.gmra.mrb[0].mxu0 %v27
    %v218 = vpop.f32.mrb[0].mxu0
    %v219 = vadd.f32 %v134, %v218
    %v220 = vpop.f32.mrb[0].mxu0
    %221 = vmatprep.mubr.f32.mxu0 0.0
    %222 = vmatmul.mubr.f32.gmra.mrb[0].mxu0 %v28
    %v223 = vpop.f32.mrb[0].mxu0
    %v224 = vadd.f32 %v139, %v223
    %v225 = vpop.f32.mrb[0].mxu0
    %226 = vmatprep.mubr.f32.mxu0 0.0
    %227 = vmatmul.mubr.f32.gmra.mrb[0].mxu0 %v29
    %v228 = vpop.f32.mrb[0].mxu0
    %v229 = vadd.f32 %v144, %v228
    %v230 = vpop.f32.mrb[0].mxu0
    %231 = vmatprep.mubr.f32.mxu0 0.0
    %232 = vmatmul.mubr.f32.gmra.mrb[0].mxu0 %v30
    %v233 = vpop.f32.mrb[0].mxu0
    %v234 = vadd.f32 %v149, %v233
    %v235 = vpop.f32.mrb[0].mxu0
    %236 = vdwg.mxu0
    %v237 = vld [vmem:[%s5] sm:$0x1]
    %v238 = vlaneseq
    %v239 = vshrl.u32 %v238, 7
    %v240 = vsub.s32 0, %v239
    %v241 = vrot.slane %v237, %v240
    %v242 = vadd.f32 %v219, %v241
    %v243 = vadd.f32 %v224, %v241
    %v244 = vadd.f32 %v229, %v241
    %v245 = vadd.f32 %v234, %v241
    %v246 = vxor.u32 %v242, 2147483648
    %v247 = vxor.u32 %v243, 2147483648
    %v248 = vxor.u32 %v244, 2147483648
    %v249 = vxor.u32 %v245, 2147483648
    %v250 = vmul.f32 %v246, 1.442695
    %v251 = vpow.pop %v250
    %v252 = vmul.f32 %v247, 1.442695
    %v253 = vpow.pop %v252
    %v254 = vmul.f32 %v248, 1.442695
    %v255 = vpow.pop %v254
    %v256 = vmul.f32 %v249, 1.442695
    %v257 = vpow.pop %v256
    %v258 = vadd.f32 %v251, 1.0
    %v259 = vadd.f32 %v253, 1.0
    %v260 = vadd.f32 %v255, 1.0
    %v261 = vadd.f32 %v257, 1.0
    %v262 = vrcp.pop %v258
    %v263 = vmul.f32 1.0, %v262
    %v264 = vrcp.pop %v259
    %v265 = vmul.f32 1.0, %v264
    %v266 = vrcp.pop %v260
    %v267 = vmul.f32 1.0, %v266
    %v268 = vrcp.pop %v261
    %v269 = vmul.f32 1.0, %v268
    %s270 = scalar_lea.vmem %s3, 128
    %v271 = vld [vmem:[%s270] sm:$0xff]
    %v272 = vld [vmem:[%s270 + $0x8] sm:$0xff]
    %v273 = vld [vmem:[%s270 + $0x10] sm:$0xff]
    %v274 = vld [vmem:[%s270 + $0x18] sm:$0xff]
    %v275 = vld [vmem:[%s270 + $0x20] sm:$0xff]
    %v276 = vld [vmem:[%s270 + $0x28] sm:$0xff]
    %v277 = vld [vmem:[%s270 + $0x30] sm:$0xff]
    %v278 = vld [vmem:[%s270 + $0x38] sm:$0xff]
    %v279 = vld [vmem:[%s270 + $0x40] sm:$0xff]
    %v280 = vld [vmem:[%s270 + $0x48] sm:$0xff]
    %v281 = vld [vmem:[%s270 + $0x50] sm:$0xff]
    %v282 = vld [vmem:[%s270 + $0x58] sm:$0xff]
    %v283 = vld [vmem:[%s270 + $0x60] sm:$0xff]
    %v284 = vld [vmem:[%s270 + $0x68] sm:$0xff]
    %v285 = vld [vmem:[%s270 + $0x70] sm:$0xff]
    %v286 = vld [vmem:[%s270 + $0x78] sm:$0xff]
    %s287 = scalar_lea.vmem %s4, 128
    %v288 = vld [vmem:[%s287] sm:$0xff]
    %v289 = vld [vmem:[%s287 + $0x8] sm:$0xff]
    %v290 = vld [vmem:[%s287 + $0x10] sm:$0xff]
    %v291 = vld [vmem:[%s287 + $0x18] sm:$0xff]
    %v292 = vld [vmem:[%s287 + $0x20] sm:$0xff]
    %v293 = vld [vmem:[%s287 + $0x28] sm:$0xff]
    %v294 = vld [vmem:[%s287 + $0x30] sm:$0xff]
    %v295 = vld [vmem:[%s287 + $0x38] sm:$0xff]
    %v296 = vld [vmem:[%s287 + $0x40] sm:$0xff]
    %v297 = vld [vmem:[%s287 + $0x48] sm:$0xff]
    %v298 = vld [vmem:[%s287 + $0x50] sm:$0xff]
    %v299 = vld [vmem:[%s287 + $0x58] sm:$0xff]
    %v300 = vld [vmem:[%s287 + $0x60] sm:$0xff]
    %v301 = vld [vmem:[%s287 + $0x68] sm:$0xff]
    %v302 = vld [vmem:[%s287 + $0x70] sm:$0xff]
    %v303 = vld [vmem:[%s287 + $0x78] sm:$0xff]
    %304 = vmatprep.subr.mxu0 0.0
    %305 = vmatpush1.msra.mxu0 %v288
    %306 = vmatprep.subr.mxu0 0.0
    %307 = vmatpush1.msra.mxu0 %v289
    %308 = vmatprep.subr.mxu0 0.0
    %309 = vmatpush1.msra.mxu0 %v290
    %310 = vmatprep.subr.mxu0 0.0
    %311 = vmatpush1.msra.mxu0 %v291
    %312 = vmatprep.subr.mxu0 0.0
    %313 = vmatpush1.msra.mxu0 %v292
    %314 = vmatprep.subr.mxu0 0.0
    %315 = vmatpush1.msra.mxu0 %v293
    %316 = vmatprep.subr.mxu0 0.0
    %317 = vmatpush1.msra.mxu0 %v294
    %318 = vmatprep.subr.mxu0 0.0
    %319 = vmatpush1.msra.mxu0 %v295
    %320 = vmatprep.subr.mxu0 0.0
    %321 = vmatpush1.msra.mxu0 %v296
    %322 = vmatprep.subr.mxu0 0.0
    %323 = vmatpush1.msra.mxu0 %v297
    %324 = vmatprep.subr.mxu0 0.0
    %325 = vmatpush1.msra.mxu0 %v298
    %326 = vmatprep.subr.mxu0 0.0
    %327 = vmatpush1.msra.mxu0 %v299
    %328 = vmatprep.subr.mxu0 0.0
    %329 = vmatpush1.msra.mxu0 %v300
    %330 = vmatprep.subr.mxu0 0.0
    %331 = vmatpush1.msra.mxu0 %v301
    %332 = vmatprep.subr.mxu0 0.0
    %333 = vmatpush1.msra.mxu0 %v302
    %334 = vmatprep.subr.mxu0 0.0
    %335 = vmatpush1.msra.mxu0 %v303
    %336 = vmatprep.subr.mxu0 0.0
    %337 = vmatpush1.msra.mxu0 0.0
    %338 = vmatprep.subr.mxu0 0.0
    %339 = vmatpush1.msra.mxu0 0.0
    %340 = vmatprep.subr.mxu0 0.0
    %341 = vmatpush1.msra.mxu0 0.0
    %342 = vmatprep.subr.mxu0 0.0
    %343 = vmatpush1.msra.mxu0 0.0
    %344 = vmatprep.subr.mxu0 0.0
    %345 = vmatpush1.msra.mxu0 0.0
    %346 = vmatprep.subr.mxu0 0.0
    %347 = vmatpush1.msra.mxu0 0.0
    %348 = vmatprep.subr.mxu0 0.0
    %349 = vmatpush1.msra.mxu0 0.0
    %350 = vmatprep.subr.mxu0 0.0
    %351 = vmatpush1.msra.mxu0 0.0
    %352 = vmatprep.subr.mxu0 0.0
    %353 = vmatpush1.msra.mxu0 0.0
    %354 = vmatprep.subr.mxu0 0.0
    %355 = vmatpush1.msra.mxu0 0.0
    %356 = vmatprep.subr.mxu0 0.0
    %357 = vmatpush1.msra.mxu0 0.0
    %358 = vmatprep.subr.mxu0 0.0
    %359 = vmatpush1.msra.mxu0 0.0
    %360 = vmatprep.subr.mxu0 0.0
    %361 = vmatpush1.msra.mxu0 0.0
    %362 = vmatprep.subr.mxu0 0.0
    %363 = vmatpush1.msra.mxu0 0.0
    %364 = vmatprep.subr.mxu0 0.0
    %365 = vmatpush1.msra.mxu0 0.0
    %366 = vmatprep.subr.mxu0 0.0
    %367 = vmatpush1.msra.mxu0 0.0
    %368 = vmatprep.mubr.f32.mxu0 0.0
    %369 = vmatmul.mubr.f32.gmra.mrb[0].mxu0 %v31
    %v370 = vpop.f32.mrb[0].mxu0
    %v371 = vadd.f32 0.0, %v370
    %v372 = vpop.f32.mrb[0].mxu0
    %373 = vmatprep.mubr.f32.mxu0 0.0
    %374 = vmatmul.mubr.f32.gmra.mrb[0].mxu0 %v32
    %v375 = vpop.f32.mrb[0].mxu0
    %v376 = vadd.f32 0.0, %v375
    %v377 = vpop.f32.mrb[0].mxu0
    %378 = vmatprep.mubr.f32.mxu0 0.0
    %379 = vmatmul.mubr.f32.gmra.mrb[0].mxu0 %v33
    %v380 = vpop.f32.mrb[0].mxu0
    %v381 = vadd.f32 0.0, %v380
    %v382 = vpop.f32.mrb[0].mxu0
    %383 = vmatprep.mubr.f32.mxu0 0.0
    %384 = vmatmul.mubr.f32.gmra.mrb[0].mxu0 %v34
    %v385 = vpop.f32.mrb[0].mxu0
    %v386 = vadd.f32 0.0, %v385
    %v387 = vpop.f32.mrb[0].mxu0
    %388 = vdwg.mxu0
    %389 = vmatprep.subr.mxu0 0.0
    %390 = vmatpush1.msra.mxu0 %v271
    %391 = vmatprep.subr.mxu0 0.0
    %392 = vmatpush1.msra.mxu0 %v272
    %393 = vmatprep.subr.mxu0 0.0
    %394 = vmatpush1.msra.mxu0 %v273
    %395 = vmatprep.subr.mxu0 0.0
    %396 = vmatpush1.msra.mxu0 %v274
    %397 = vmatprep.subr.mxu0 0.0
    %398 = vmatpush1.msra.mxu0 %v275
    %399 = vmatprep.subr.mxu0 0.0
    %400 = vmatpush1.msra.mxu0 %v276
    %401 = vmatprep.subr.mxu0 0.0
    %402 = vmatpush1.msra.mxu0 %v277
    %403 = vmatprep.subr.mxu0 0.0
    %404 = vmatpush1.msra.mxu0 %v278
    %405 = vmatprep.subr.mxu0 0.0
    %406 = vmatpush1.msra.mxu0 %v279
    %407 = vmatprep.subr.mxu0 0.0
    %408 = vmatpush1.msra.mxu0 %v280
    %409 = vmatprep.subr.mxu0 0.0
    %410 = vmatpush1.msra.mxu0 %v281
    %411 = vmatprep.subr.mxu0 0.0
    %412 = vmatpush1.msra.mxu0 %v282
    %413 = vmatprep.subr.mxu0 0.0
    %414 = vmatpush1.msra.mxu0 %v283
    %415 = vmatprep.subr.mxu0 0.0
    %416 = vmatpush1.msra.mxu0 %v284
    %417 = vmatprep.subr.mxu0 0.0
    %418 = vmatpush1.msra.mxu0 %v285
    %419 = vmatprep.subr.mxu0 0.0
    %420 = vmatpush1.msra.mxu0 %v286
    %421 = vmatprep.subr.mxu0 0.0
    %422 = vmatpush1.msra.mxu0 0.0
    %423 = vmatprep.subr.mxu0 0.0
    %424 = vmatpush1.msra.mxu0 0.0
    %425 = vmatprep.subr.mxu0 0.0
    %426 = vmatpush1.msra.mxu0 0.0
    %427 = vmatprep.subr.mxu0 0.0
    %428 = vmatpush1.msra.mxu0 0.0
    %429 = vmatprep.subr.mxu0 0.0
    %430 = vmatpush1.msra.mxu0 0.0
    %431 = vmatprep.subr.mxu0 0.0
    %432 = vmatpush1.msra.mxu0 0.0
    %433 = vmatprep.subr.mxu0 0.0
    %434 = vmatpush1.msra.mxu0 0.0
    %435 = vmatprep.subr.mxu0 0.0
    %436 = vmatpush1.msra.mxu0 0.0
    %437 = vmatprep.subr.mxu0 0.0
    %438 = vmatpush1.msra.mxu0 0.0
    %439 = vmatprep.subr.mxu0 0.0
    %440 = vmatpush1.msra.mxu0 0.0
    %441 = vmatprep.subr.mxu0 0.0
    %442 = vmatpush1.msra.mxu0 0.0
    %443 = vmatprep.subr.mxu0 0.0
    %444 = vmatpush1.msra.mxu0 0.0
    %445 = vmatprep.subr.mxu0 0.0
    %446 = vmatpush1.msra.mxu0 0.0
    %447 = vmatprep.subr.mxu0 0.0
    %448 = vmatpush1.msra.mxu0 0.0
    %449 = vmatprep.subr.mxu0 0.0
    %450 = vmatpush1.msra.mxu0 0.0
    %451 = vmatprep.subr.mxu0 0.0
    %452 = vmatpush1.msra.mxu0 0.0
    %453 = vmatprep.mubr.f32.mxu0 0.0
    %454 = vmatmul.mubr.f32.gmra.mrb[0].mxu0 %v27
    %v455 = vpop.f32.mrb[0].mxu0
    %v456 = vadd.f32 %v371, %v455
    %v457 = vpop.f32.mrb[0].mxu0
    %458 = vmatprep.mubr.f32.mxu0 0.0
    %459 = vmatmul.mubr.f32.gmra.mrb[0].mxu0 %v28
    %v460 = vpop.f32.mrb[0].mxu0
    %v461 = vadd.f32 %v376, %v460
    %v462 = vpop.f32.mrb[0].mxu0
    %463 = vmatprep.mubr.f32.mxu0 0.0
    %464 = vmatmul.mubr.f32.gmra.mrb[0].mxu0 %v29
    %v465 = vpop.f32.mrb[0].mxu0
    %v466 = vadd.f32 %v381, %v465
    %v467 = vpop.f32.mrb[0].mxu0
    %468 = vmatprep.mubr.f32.mxu0 0.0
    %469 = vmatmul.mubr.f32.gmra.mrb[0].mxu0 %v30
    %v470 = vpop.f32.mrb[0].mxu0
    %v471 = vadd.f32 %v386, %v470
    %v472 = vpop.f32.mrb[0].mxu0
    %473 = vdwg.mxu0
    %v474 = vld [vmem:[%s5 + $0x1] sm:$0x1]
    %v475 = vlaneseq
    %v476 = vshrl.u32 %v475, 7
    %v477 = vsub.s32 0, %v476
    %v478 = vrot.slane %v474, %v477
    %v479 = vadd.f32 %v456, %v478
    %v480 = vadd.f32 %v461, %v478
    %v481 = vadd.f32 %v466, %v478
    %v482 = vadd.f32 %v471, %v478
    %v483 = vxor.u32 %v479, 2147483648
    %v484 = vxor.u32 %v480, 2147483648
    %v485 = vxor.u32 %v481, 2147483648
    %v486 = vxor.u32 %v482, 2147483648
    %v487 = vmul.f32 %v483, 1.442695
    %v488 = vpow.pop %v487
    %v489 = vmul.f32 %v484, 1.442695
    %v490 = vpow.pop %v489
    %v491 = vmul.f32 %v485, 1.442695
    %v492 = vpow.pop %v491
    %v493 = vmul.f32 %v486, 1.442695
    %v494 = vpow.pop %v493
    %v495 = vadd.f32 %v488, 1.0
    %v496 = vadd.f32 %v490, 1.0
    %v497 = vadd.f32 %v492, 1.0
    %v498 = vadd.f32 %v494, 1.0
    %v499 = vrcp.pop %v495
    %v500 = vmul.f32 1.0, %v499
    %v501 = vrcp.pop %v496
    %v502 = vmul.f32 1.0, %v501
    %v503 = vrcp.pop %v497
    %v504 = vmul.f32 1.0, %v503
    %v505 = vrcp.pop %v498
    %v506 = vmul.f32 1.0, %v505
    %s507 = scalar_lea.vmem %s3, 256
    %v508 = vld [vmem:[%s507] sm:$0xff]
    %v509 = vld [vmem:[%s507 + $0x8] sm:$0xff]
    %v510 = vld [vmem:[%s507 + $0x10] sm:$0xff]
    %v511 = vld [vmem:[%s507 + $0x18] sm:$0xff]
    %v512 = vld [vmem:[%s507 + $0x20] sm:$0xff]
    %v513 = vld [vmem:[%s507 + $0x28] sm:$0xff]
    %v514 = vld [vmem:[%s507 + $0x30] sm:$0xff]
    %v515 = vld [vmem:[%s507 + $0x38] sm:$0xff]
    %v516 = vld [vmem:[%s507 + $0x40] sm:$0xff]
    %v517 = vld [vmem:[%s507 + $0x48] sm:$0xff]
    %v518 = vld [vmem:[%s507 + $0x50] sm:$0xff]
    %v519 = vld [vmem:[%s507 + $0x58] sm:$0xff]
    %v520 = vld [vmem:[%s507 + $0x60] sm:$0xff]
    %v521 = vld [vmem:[%s507 + $0x68] sm:$0xff]
    %v522 = vld [vmem:[%s507 + $0x70] sm:$0xff]
    %v523 = vld [vmem:[%s507 + $0x78] sm:$0xff]
    %s524 = scalar_lea.vmem %s4, 256
    %v525 = vld [vmem:[%s524] sm:$0xff]
    %v526 = vld [vmem:[%s524 + $0x8] sm:$0xff]
    %v527 = vld [vmem:[%s524 + $0x10] sm:$0xff]
    %v528 = vld [vmem:[%s524 + $0x18] sm:$0xff]
    %v529 = vld [vmem:[%s524 + $0x20] sm:$0xff]
    %v530 = vld [vmem:[%s524 + $0x28] sm:$0xff]
    %v531 = vld [vmem:[%s524 + $0x30] sm:$0xff]
    %v532 = vld [vmem:[%s524 + $0x38] sm:$0xff]
    %v533 = vld [vmem:[%s524 + $0x40] sm:$0xff]
    %v534 = vld [vmem:[%s524 + $0x48] sm:$0xff]
    %v535 = vld [vmem:[%s524 + $0x50] sm:$0xff]
    %v536 = vld [vmem:[%s524 + $0x58] sm:$0xff]
    %v537 = vld [vmem:[%s524 + $0x60] sm:$0xff]
    %v538 = vld [vmem:[%s524 + $0x68] sm:$0xff]
    %v539 = vld [vmem:[%s524 + $0x70] sm:$0xff]
    %v540 = vld [vmem:[%s524 + $0x78] sm:$0xff]
    %541 = vmatprep.subr.mxu0 0.0
    %542 = vmatpush1.msra.mxu0 %v525
    %543 = vmatprep.subr.mxu0 0.0
    %544 = vmatpush1.msra.mxu0 %v526
    %545 = vmatprep.subr.mxu0 0.0
    %546 = vmatpush1.msra.mxu0 %v527
    %547 = vmatprep.subr.mxu0 0.0
    %548 = vmatpush1.msra.mxu0 %v528
    %549 = vmatprep.subr.mxu0 0.0
    %550 = vmatpush1.msra.mxu0 %v529
    %551 = vmatprep.subr.mxu0 0.0
    %552 = vmatpush1.msra.mxu0 %v530
    %553 = vmatprep.subr.mxu0 0.0
    %554 = vmatpush1.msra.mxu0 %v531
    %555 = vmatprep.subr.mxu0 0.0
    %556 = vmatpush1.msra.mxu0 %v532
    %557 = vmatprep.subr.mxu0 0.0
    %558 = vmatpush1.msra.mxu0 %v533
    %559 = vmatprep.subr.mxu0 0.0
    %560 = vmatpush1.msra.mxu0 %v534
    %561 = vmatprep.subr.mxu0 0.0
    %562 = vmatpush1.msra.mxu0 %v535
    %563 = vmatprep.subr.mxu0 0.0
    %564 = vmatpush1.msra.mxu0 %v536
    %565 = vmatprep.subr.mxu0 0.0
    %566 = vmatpush1.msra.mxu0 %v537
    %567 = vmatprep.subr.mxu0 0.0
    %568 = vmatpush1.msra.mxu0 %v538
    %569 = vmatprep.subr.mxu0 0.0
    %570 = vmatpush1.msra.mxu0 %v539
    %571 = vmatprep.subr.mxu0 0.0
    %572 = vmatpush1.msra.mxu0 %v540
    %573 = vmatprep.subr.mxu0 0.0
    %574 = vmatpush1.msra.mxu0 0.0
    %575 = vmatprep.subr.mxu0 0.0
    %576 = vmatpush1.msra.mxu0 0.0
    %577 = vmatprep.subr.mxu0 0.0
    %578 = vmatpush1.msra.mxu0 0.0
    %579 = vmatprep.subr.mxu0 0.0
    %580 = vmatpush1.msra.mxu0 0.0
    %581 = vmatprep.subr.mxu0 0.0
    %582 = vmatpush1.msra.mxu0 0.0
    %583 = vmatprep.subr.mxu0 0.0
    %584 = vmatpush1.msra.mxu0 0.0
    %585 = vmatprep.subr.mxu0 0.0
    %586 = vmatpush1.msra.mxu0 0.0
    %587 = vmatprep.subr.mxu0 0.0
    %588 = vmatpush1.msra.mxu0 0.0
    %589 = vmatprep.subr.mxu0 0.0
    %590 = vmatpush1.msra.mxu0 0.0
    %591 = vmatprep.subr.mxu0 0.0
    %592 = vmatpush1.msra.mxu0 0.0
    %593 = vmatprep.subr.mxu0 0.0
    %594 = vmatpush1.msra.mxu0 0.0
    %595 = vmatprep.subr.mxu0 0.0
    %596 = vmatpush1.msra.mxu0 0.0
    %597 = vmatprep.subr.mxu0 0.0
    %598 = vmatpush1.msra.mxu0 0.0
    %599 = vmatprep.subr.mxu0 0.0
    %600 = vmatpush1.msra.mxu0 0.0
    %601 = vmatprep.subr.mxu0 0.0
    %602 = vmatpush1.msra.mxu0 0.0
    %603 = vmatprep.subr.mxu0 0.0
    %604 = vmatpush1.msra.mxu0 0.0
    %605 = vmatprep.mubr.f32.mxu0 0.0
    %606 = vmatmul.mubr.f32.gmra.mrb[0].mxu0 %v31
    %v607 = vpop.f32.mrb[0].mxu0
    %v608 = vadd.f32 0.0, %v607
    %v609 = vpop.f32.mrb[0].mxu0
    %610 = vmatprep.mubr.f32.mxu0 0.0
    %611 = vmatmul.mubr.f32.gmra.mrb[0].mxu0 %v32
    %v612 = vpop.f32.mrb[0].mxu0
    %v613 = vadd.f32 0.0, %v612
    %v614 = vpop.f32.mrb[0].mxu0
    %615 = vmatprep.mubr.f32.mxu0 0.0
    %616 = vmatmul.mubr.f32.gmra.mrb[0].mxu0 %v33
    %v617 = vpop.f32.mrb[0].mxu0
    %v618 = vadd.f32 0.0, %v617
    %v619 = vpop.f32.mrb[0].mxu0
    %620 = vmatprep.mubr.f32.mxu0 0.0
    %621 = vmatmul.mubr.f32.gmra.mrb[0].mxu0 %v34
    %v622 = vpop.f32.mrb[0].mxu0
    %v623 = vadd.f32 0.0, %v622
    %v624 = vpop.f32.mrb[0].mxu0
    %625 = vdwg.mxu0
    %626 = vmatprep.subr.mxu0 0.0
    %627 = vmatpush1.msra.mxu0 %v508
    %628 = vmatprep.subr.mxu0 0.0
    %629 = vmatpush1.msra.mxu0 %v509
    %630 = vmatprep.subr.mxu0 0.0
    %631 = vmatpush1.msra.mxu0 %v510
    %632 = vmatprep.subr.mxu0 0.0
    %633 = vmatpush1.msra.mxu0 %v511
    %634 = vmatprep.subr.mxu0 0.0
    %635 = vmatpush1.msra.mxu0 %v512
    %636 = vmatprep.subr.mxu0 0.0
    %637 = vmatpush1.msra.mxu0 %v513
    %638 = vmatprep.subr.mxu0 0.0
    %639 = vmatpush1.msra.mxu0 %v514
    %640 = vmatprep.subr.mxu0 0.0
    %641 = vmatpush1.msra.mxu0 %v515
    %642 = vmatprep.subr.mxu0 0.0
    %643 = vmatpush1.msra.mxu0 %v516
    %644 = vmatprep.subr.mxu0 0.0
    %645 = vmatpush1.msra.mxu0 %v517
    %646 = vmatprep.subr.mxu0 0.0
    %647 = vmatpush1.msra.mxu0 %v518
    %648 = vmatprep.subr.mxu0 0.0
    %649 = vmatpush1.msra.mxu0 %v519
    %650 = vmatprep.subr.mxu0 0.0
    %651 = vmatpush1.msra.mxu0 %v520
    %652 = vmatprep.subr.mxu0 0.0
    %653 = vmatpush1.msra.mxu0 %v521
    %654 = vmatprep.subr.mxu0 0.0
    %655 = vmatpush1.msra.mxu0 %v522
    %656 = vmatprep.subr.mxu0 0.0
    %657 = vmatpush1.msra.mxu0 %v523
    %658 = vmatprep.subr.mxu0 0.0
    %659 = vmatpush1.msra.mxu0 0.0
    %660 = vmatprep.subr.mxu0 0.0
    %661 = vmatpush1.msra.mxu0 0.0
    %662 = vmatprep.subr.mxu0 0.0
    %663 = vmatpush1.msra.mxu0 0.0
    %664 = vmatprep.subr.mxu0 0.0
    %665 = vmatpush1.msra.mxu0 0.0
    %666 = vmatprep.subr.mxu0 0.0
    %667 = vmatpush1.msra.mxu0 0.0
    %668 = vmatprep.subr.mxu0 0.0
    %669 = vmatpush1.msra.mxu0 0.0
    %670 = vmatprep.subr.mxu0 0.0
    %671 = vmatpush1.msra.mxu0 0.0
    %672 = vmatprep.subr.mxu0 0.0
    %673 = vmatpush1.msra.mxu0 0.0
    %674 = vmatprep.subr.mxu0 0.0
    %675 = vmatpush1.msra.mxu0 0.0
    %676 = vmatprep.subr.mxu0 0.0
    %677 = vmatpush1.msra.mxu0 0.0
    %678 = vmatprep.subr.mxu0 0.0
    %679 = vmatpush1.msra.mxu0 0.0
    %680 = vmatprep.subr.mxu0 0.0
    %681 = vmatpush1.msra.mxu0 0.0
    %682 = vmatprep.subr.mxu0 0.0
    %683 = vmatpush1.msra.mxu0 0.0
    %684 = vmatprep.subr.mxu0 0.0
    %685 = vmatpush1.msra.mxu0 0.0
    %686 = vmatprep.subr.mxu0 0.0
    %687 = vmatpush1.msra.mxu0 0.0
    %688 = vmatprep.subr.mxu0 0.0
    %689 = vmatpush1.msra.mxu0 0.0
    %690 = vmatprep.mubr.f32.mxu0 0.0
    %691 = vmatmul.mubr.f32.gmra.mrb[0].mxu0 %v27
    %v692 = vpop.f32.mrb[0].mxu0
    %v693 = vadd.f32 %v608, %v692
    %v694 = vpop.f32.mrb[0].mxu0
    %695 = vmatprep.mubr.f32.mxu0 0.0
    %696 = vmatmul.mubr.f32.gmra.mrb[0].mxu0 %v28
    %v697 = vpop.f32.mrb[0].mxu0
    %v698 = vadd.f32 %v613, %v697
    %v699 = vpop.f32.mrb[0].mxu0
    %700 = vmatprep.mubr.f32.mxu0 0.0
    %701 = vmatmul.mubr.f32.gmra.mrb[0].mxu0 %v29
    %v702 = vpop.f32.mrb[0].mxu0
    %v703 = vadd.f32 %v618, %v702
    %v704 = vpop.f32.mrb[0].mxu0
    %705 = vmatprep.mubr.f32.mxu0 0.0
    %706 = vmatmul.mubr.f32.gmra.mrb[0].mxu0 %v30
    %v707 = vpop.f32.mrb[0].mxu0
    %v708 = vadd.f32 %v623, %v707
    %v709 = vpop.f32.mrb[0].mxu0
    %710 = vdwg.mxu0
    %v711 = vld [vmem:[%s5 + $0x2] sm:$0x1]
    %v712 = vlaneseq
    %v713 = vshrl.u32 %v712, 7
    %v714 = vsub.s32 0, %v713
    %v715 = vrot.slane %v711, %v714
    %v716 = vadd.f32 %v693, %v715
    %v717 = vadd.f32 %v698, %v715
    %v718 = vadd.f32 %v703, %v715
    %v719 = vadd.f32 %v708, %v715
    %v720 = vxor.u32 %v716, 2147483648
    %v721 = vxor.u32 %v717, 2147483648
    %v722 = vxor.u32 %v718, 2147483648
    %v723 = vxor.u32 %v719, 2147483648
    %v724 = vmul.f32 %v720, 1.442695
    %v725 = vpow.pop %v724
    %v726 = vmul.f32 %v721, 1.442695
    %v727 = vpow.pop %v726
    %v728 = vmul.f32 %v722, 1.442695
    %v729 = vpow.pop %v728
    %v730 = vmul.f32 %v723, 1.442695
    %v731 = vpow.pop %v730
    %v732 = vadd.f32 %v725, 1.0
    %v733 = vadd.f32 %v727, 1.0
    %v734 = vadd.f32 %v729, 1.0
    %v735 = vadd.f32 %v731, 1.0
    %v736 = vrcp.pop %v732
    %v737 = vmul.f32 1.0, %v736
    %v738 = vrcp.pop %v733
    %v739 = vmul.f32 1.0, %v738
    %v740 = vrcp.pop %v734
    %v741 = vmul.f32 1.0, %v740
    %v742 = vrcp.pop %v735
    %v743 = vmul.f32 1.0, %v742
    %s744 = scalar_lea.vmem %s3, 384
    %v745 = vld [vmem:[%s744] sm:$0xff]
    %v746 = vld [vmem:[%s744 + $0x8] sm:$0xff]
    %v747 = vld [vmem:[%s744 + $0x10] sm:$0xff]
    %v748 = vld [vmem:[%s744 + $0x18] sm:$0xff]
    %v749 = vld [vmem:[%s744 + $0x20] sm:$0xff]
    %v750 = vld [vmem:[%s744 + $0x28] sm:$0xff]
    %v751 = vld [vmem:[%s744 + $0x30] sm:$0xff]
    %v752 = vld [vmem:[%s744 + $0x38] sm:$0xff]
    %v753 = vld [vmem:[%s744 + $0x40] sm:$0xff]
    %v754 = vld [vmem:[%s744 + $0x48] sm:$0xff]
    %v755 = vld [vmem:[%s744 + $0x50] sm:$0xff]
    %v756 = vld [vmem:[%s744 + $0x58] sm:$0xff]
    %v757 = vld [vmem:[%s744 + $0x60] sm:$0xff]
    %v758 = vld [vmem:[%s744 + $0x68] sm:$0xff]
    %v759 = vld [vmem:[%s744 + $0x70] sm:$0xff]
    %v760 = vld [vmem:[%s744 + $0x78] sm:$0xff]
    %s761 = scalar_lea.vmem %s4, 384
    %v762 = vld [vmem:[%s761] sm:$0xff]
    %v763 = vld [vmem:[%s761 + $0x8] sm:$0xff]
    %v764 = vld [vmem:[%s761 + $0x10] sm:$0xff]
    %v765 = vld [vmem:[%s761 + $0x18] sm:$0xff]
    %v766 = vld [vmem:[%s761 + $0x20] sm:$0xff]
    %v767 = vld [vmem:[%s761 + $0x28] sm:$0xff]
    %v768 = vld [vmem:[%s761 + $0x30] sm:$0xff]
    %v769 = vld [vmem:[%s761 + $0x38] sm:$0xff]
    %v770 = vld [vmem:[%s761 + $0x40] sm:$0xff]
    %v771 = vld [vmem:[%s761 + $0x48] sm:$0xff]
    %v772 = vld [vmem:[%s761 + $0x50] sm:$0xff]
    %v773 = vld [vmem:[%s761 + $0x58] sm:$0xff]
    %v774 = vld [vmem:[%s761 + $0x60] sm:$0xff]
    %v775 = vld [vmem:[%s761 + $0x68] sm:$0xff]
    %v776 = vld [vmem:[%s761 + $0x70] sm:$0xff]
    %v777 = vld [vmem:[%s761 + $0x78] sm:$0xff]
    %778 = vmatprep.subr.mxu0 0.0
    %779 = vmatpush1.msra.mxu0 %v762
    %780 = vmatprep.subr.mxu0 0.0
    %781 = vmatpush1.msra.mxu0 %v763
    %782 = vmatprep.subr.mxu0 0.0
    %783 = vmatpush1.msra.mxu0 %v764
    %784 = vmatprep.subr.mxu0 0.0
    %785 = vmatpush1.msra.mxu0 %v765
    %786 = vmatprep.subr.mxu0 0.0
    %787 = vmatpush1.msra.mxu0 %v766
    %788 = vmatprep.subr.mxu0 0.0
    %789 = vmatpush1.msra.mxu0 %v767
    %790 = vmatprep.subr.mxu0 0.0
    %791 = vmatpush1.msra.mxu0 %v768
    %792 = vmatprep.subr.mxu0 0.0
    %793 = vmatpush1.msra.mxu0 %v769
    %794 = vmatprep.subr.mxu0 0.0
    %795 = vmatpush1.msra.mxu0 %v770
    %796 = vmatprep.subr.mxu0 0.0
    %797 = vmatpush1.msra.mxu0 %v771
    %798 = vmatprep.subr.mxu0 0.0
    %799 = vmatpush1.msra.mxu0 %v772
    %800 = vmatprep.subr.mxu0 0.0
    %801 = vmatpush1.msra.mxu0 %v773
    %802 = vmatprep.subr.mxu0 0.0
    %803 = vmatpush1.msra.mxu0 %v774
    %804 = vmatprep.subr.mxu0 0.0
    %805 = vmatpush1.msra.mxu0 %v775
    %806 = vmatprep.subr.mxu0 0.0
    %807 = vmatpush1.msra.mxu0 %v776
    %808 = vmatprep.subr.mxu0 0.0
    %809 = vmatpush1.msra.mxu0 %v777
    %810 = vmatprep.subr.mxu0 0.0
    %811 = vmatpush1.msra.mxu0 0.0
    %812 = vmatprep.subr.mxu0 0.0
    %813 = vmatpush1.msra.mxu0 0.0
    %814 = vmatprep.subr.mxu0 0.0
    %815 = vmatpush1.msra.mxu0 0.0
    %816 = vmatprep.subr.mxu0 0.0
    %817 = vmatpush1.msra.mxu0 0.0
    %818 = vmatprep.subr.mxu0 0.0
    %819 = vmatpush1.msra.mxu0 0.0
    %820 = vmatprep.subr.mxu0 0.0
    %821 = vmatpush1.msra.mxu0 0.0
    %822 = vmatprep.subr.mxu0 0.0
    %823 = vmatpush1.msra.mxu0 0.0
    %824 = vmatprep.subr.mxu0 0.0
    %825 = vmatpush1.msra.mxu0 0.0
    %826 = vmatprep.subr.mxu0 0.0
    %827 = vmatpush1.msra.mxu0 0.0
    %828 = vmatprep.subr.mxu0 0.0
    %829 = vmatpush1.msra.mxu0 0.0
    %830 = vmatprep.subr.mxu0 0.0
    %831 = vmatpush1.msra.mxu0 0.0
    %832 = vmatprep.subr.mxu0 0.0
    %833 = vmatpush1.msra.mxu0 0.0
    %834 = vmatprep.subr.mxu0 0.0
    %835 = vmatpush1.msra.mxu0 0.0
    %836 = vmatprep.subr.mxu0 0.0
    %837 = vmatpush1.msra.mxu0 0.0
    %838 = vmatprep.subr.mxu0 0.0
    %839 = vmatpush1.msra.mxu0 0.0
    %840 = vmatprep.subr.mxu0 0.0
    %841 = vmatpush1.msra.mxu0 0.0
    %842 = vmatprep.mubr.f32.mxu0 0.0
    %843 = vmatmul.mubr.f32.gmra.mrb[0].mxu0 %v31
    %v844 = vpop.f32.mrb[0].mxu0
    %v845 = vadd.f32 0.0, %v844
    %v846 = vpop.f32.mrb[0].mxu0
    %847 = vmatprep.mubr.f32.mxu0 0.0
    %848 = vmatmul.mubr.f32.gmra.mrb[0].mxu0 %v32
    %v849 = vpop.f32.mrb[0].mxu0
    %v850 = vadd.f32 0.0, %v849
    %v851 = vpop.f32.mrb[0].mxu0
    %852 = vmatprep.mubr.f32.mxu0 0.0
    %853 = vmatmul.mubr.f32.gmra.mrb[0].mxu0 %v33
    %v854 = vpop.f32.mrb[0].mxu0
    %v855 = vadd.f32 0.0, %v854
    %v856 = vpop.f32.mrb[0].mxu0
    %857 = vmatprep.mubr.f32.mxu0 0.0
    %858 = vmatmul.mubr.f32.gmra.mrb[0].mxu0 %v34
    %v859 = vpop.f32.mrb[0].mxu0
    %v860 = vadd.f32 0.0, %v859
    %v861 = vpop.f32.mrb[0].mxu0
    %862 = vdwg.mxu0
    %863 = vmatprep.subr.mxu0 0.0
    %864 = vmatpush1.msra.mxu0 %v745
    %865 = vmatprep.subr.mxu0 0.0
    %866 = vmatpush1.msra.mxu0 %v746
    %867 = vmatprep.subr.mxu0 0.0
    %868 = vmatpush1.msra.mxu0 %v747
    %869 = vmatprep.subr.mxu0 0.0
    %870 = vmatpush1.msra.mxu0 %v748
    %871 = vmatprep.subr.mxu0 0.0
    %872 = vmatpush1.msra.mxu0 %v749
    %873 = vmatprep.subr.mxu0 0.0
    %874 = vmatpush1.msra.mxu0 %v750
    %875 = vmatprep.subr.mxu0 0.0
    %876 = vmatpush1.msra.mxu0 %v751
    %877 = vmatprep.subr.mxu0 0.0
    %878 = vmatpush1.msra.mxu0 %v752
    %879 = vmatprep.subr.mxu0 0.0
    %880 = vmatpush1.msra.mxu0 %v753
    %881 = vmatprep.subr.mxu0 0.0
    %882 = vmatpush1.msra.mxu0 %v754
    %883 = vmatprep.subr.mxu0 0.0
    %884 = vmatpush1.msra.mxu0 %v755
    %885 = vmatprep.subr.mxu0 0.0
    %886 = vmatpush1.msra.mxu0 %v756
    %887 = vmatprep.subr.mxu0 0.0
    %888 = vmatpush1.msra.mxu0 %v757
    %889 = vmatprep.subr.mxu0 0.0
    %890 = vmatpush1.msra.mxu0 %v758
    %891 = vmatprep.subr.mxu0 0.0
    %892 = vmatpush1.msra.mxu0 %v759
    %893 = vmatprep.subr.mxu0 0.0
    %894 = vmatpush1.msra.mxu0 %v760
    %895 = vmatprep.subr.mxu0 0.0
    %896 = vmatpush1.msra.mxu0 0.0
    %897 = vmatprep.subr.mxu0 0.0
    %898 = vmatpush1.msra.mxu0 0.0
    %899 = vmatprep.subr.mxu0 0.0
    %900 = vmatpush1.msra.mxu0 0.0
    %901 = vmatprep.subr.mxu0 0.0
    %902 = vmatpush1.msra.mxu0 0.0
    %903 = vmatprep.subr.mxu0 0.0
    %904 = vmatpush1.msra.mxu0 0.0
    %905 = vmatprep.subr.mxu0 0.0
    %906 = vmatpush1.msra.mxu0 0.0
    %907 = vmatprep.subr.mxu0 0.0
    %908 = vmatpush1.msra.mxu0 0.0
    %909 = vmatprep.subr.mxu0 0.0
    %910 = vmatpush1.msra.mxu0 0.0
    %911 = vmatprep.subr.mxu0 0.0
    %912 = vmatpush1.msra.mxu0 0.0
    %913 = vmatprep.subr.mxu0 0.0
    %914 = vmatpush1.msra.mxu0 0.0
    %915 = vmatprep.subr.mxu0 0.0
    %916 = vmatpush1.msra.mxu0 0.0
    %917 = vmatprep.subr.mxu0 0.0
    %918 = vmatpush1.msra.mxu0 0.0
    %919 = vmatprep.subr.mxu0 0.0
    %920 = vmatpush1.msra.mxu0 0.0
    %921 = vmatprep.subr.mxu0 0.0
    %922 = vmatpush1.msra.mxu0 0.0
    %923 = vmatprep.subr.mxu0 0.0
    %924 = vmatpush1.msra.mxu0 0.0
    %925 = vmatprep.subr.mxu0 0.0
    %926 = vmatpush1.msra.mxu0 0.0
    %927 = vmatprep.mubr.f32.mxu0 0.0
    %928 = vmatmul.mubr.f32.gmra.mrb[0].mxu0 %v27
    %v929 = vpop.f32.mrb[0].mxu0
    %v930 = vadd.f32 %v845, %v929
    %v931 = vpop.f32.mrb[0].mxu0
    %932 = vmatprep.mubr.f32.mxu0 0.0
    %933 = vmatmul.mubr.f32.gmra.mrb[0].mxu0 %v28
    %v934 = vpop.f32.mrb[0].mxu0
    %v935 = vadd.f32 %v850, %v934
    %v936 = vpop.f32.mrb[0].mxu0
    %937 = vmatprep.mubr.f32.mxu0 0.0
    %938 = vmatmul.mubr.f32.gmra.mrb[0].mxu0 %v29
    %v939 = vpop.f32.mrb[0].mxu0
    %v940 = vadd.f32 %v855, %v939
    %v941 = vpop.f32.mrb[0].mxu0
    %942 = vmatprep.mubr.f32.mxu0 0.0
    %943 = vmatmul.mubr.f32.gmra.mrb[0].mxu0 %v30
    %v944 = vpop.f32.mrb[0].mxu0
    %v945 = vadd.f32 %v860, %v944
    %v946 = vpop.f32.mrb[0].mxu0
    %947 = vdwg.mxu0
    %v948 = vld [vmem:[%s5 + $0x3] sm:$0x1]
    %v949 = vlaneseq
    %v950 = vshrl.u32 %v949, 7
    %v951 = vsub.s32 0, %v950
    %v952 = vrot.slane %v948, %v951
    %v953 = vadd.f32 %v930, %v952
    %v954 = vadd.f32 %v935, %v952
    %v955 = vadd.f32 %v940, %v952
    %v956 = vadd.f32 %v945, %v952
    %v957 = vtanh.pop %v953
    %v958 = vtanh.pop %v954
    %v959 = vtanh.pop %v955
    %v960 = vtanh.pop %v956
    %v961 = vld [vmem:[%s2] sm:$0xff]
    %v962 = vld [vmem:[%s2 + $0x8] sm:$0xff]
    %v963 = vld [vmem:[%s2 + $0x10] sm:$0xff]
    %v964 = vld [vmem:[%s2 + $0x18] sm:$0xff]
    %v965 = vmul.f32 %v500, %v961
    %v966 = vmul.f32 %v502, %v962
    %v967 = vmul.f32 %v504, %v963
    %v968 = vmul.f32 %v506, %v964
    %v969 = vmul.f32 %v263, %v957
    %v970 = vmul.f32 %v265, %v958
    %v971 = vmul.f32 %v267, %v959
    %v972 = vmul.f32 %v269, %v960
    %v973 = vadd.f32 %v965, %v969
    %v974 = vadd.f32 %v966, %v970
    %v975 = vadd.f32 %v967, %v971
    %v976 = vadd.f32 %v968, %v972
    %v977 = vtanh.pop %v973
    %v978 = vtanh.pop %v974
    %v979 = vtanh.pop %v975
    %v980 = vtanh.pop %v976
    %v981 = vmul.f32 %v737, %v977
    %v982 = vmul.f32 %v739, %v978
    %v983 = vmul.f32 %v741, %v979
    %v984 = vmul.f32 %v743, %v980
    %985 = vst [vmem:[#allocation4] sm:$0xff] %v973
    %986 = vst [vmem:[#allocation4 + $0x8] sm:$0xff] %v974
    %987 = vst [vmem:[#allocation4 + $0x10] sm:$0xff] %v975
    %988 = vst [vmem:[#allocation4 + $0x18] sm:$0xff] %v976
    %989 = vst [vmem:[#allocation2] sm:$0xff] %v981
    %990 = vst [vmem:[#allocation2 + $0x8] sm:$0xff] %v982
    %991 = vst [vmem:[#allocation2 + $0x10] sm:$0xff] %v983
    %992 = vst [vmem:[#allocation2 + $0x18] sm:$0xff] %v984
    // Predicated region
    $region26: #{graph_lstm_cell.1} parent=1 // pred_check
      _
    $region27: #{graph_lstm_cell.1} parent=1 // pred_check_branch
      %994 = sbr.rel (0) target = $region29
    $region28: #{graph_lstm_cell.1} parent=1 // pred_region
      %s996 = ssub.s32 512, 512
      %997 = vsyncadd [#allocation3], %s996
      %s998 = sshll.u32 [#allocation2], 4
      %s999 = int_to_ptr.vmem [resolvable:$true] %s998
      %1004 = dma.vmem_to_hbm [thread:$0]  %s999, 512, %s6, [#allocation3], 128, 128, 8
    $region29: #{graph_lstm_cell.1} parent=1 // pred_fallthru
      _
    // Predicated region
    $region30: #{graph_lstm_cell.1} parent=1 // pred_check
      _
    $region31: #{graph_lstm_cell.1} parent=1 // pred_check_branch
      %1006 = sbr.rel (0) target = $region33
    $region32: #{graph_lstm_cell.1} parent=1 // pred_region
      %s1008 = ssub.s32 512, 512
      %1009 = vsyncadd [#allocation5], %s1008
      %s1010 = sshll.u32 [#allocation4], 4
      %s1011 = int_to_ptr.vmem [resolvable:$true] %s1010
      %1016 = dma.vmem_to_hbm [thread:$0]  %s1011, 512, %s7, [#allocation5], 128, 128, 8
    $region33: #{graph_lstm_cell.1} parent=1 // pred_fallthru
      _
    // Predicated region
    $region34: #{graph_lstm_cell.1} parent=1 // pred_check
      _
    $region35: #{graph_lstm_cell.1} parent=1 // pred_check_branch
      %1018 = sbr.rel (0) target = $region37
    $region36: #{graph_lstm_cell.1} parent=1 // pred_region
      %1019 = dma.done [#allocation3], 512
    $region37: #{graph_lstm_cell.1} parent=1 // pred_fallthru
      _
    // Predicated region
    $region38: #{graph_lstm_cell.1} parent=1 // pred_check
      _
    $region39: #{graph_lstm_cell.1} parent=1 // pred_check_branch
      %1021 = sbr.rel (0) target = $region41
    $region40: #{graph_lstm_cell.1} parent=1 // pred_region
      %1022 = dma.done [#allocation5], 512
    $region41: #{graph_lstm_cell.1} parent=1 // pred_fallthru
      _
    %1023 = vsyncpa [#allocation3], 1
    %1024 = vsyncpa [#allocation5], 1

</llo_original>
